<compile_context>
chip_gen: v7x
topology: tpu7x:2x2x1
jax: 0.10.0
libtpu: 0.0.40
codegen_flags: <defaults>
</compile_context>

<pallas_src>
import functools

import jax
import jax.numpy as jnp
from jax.experimental import pallas as pl
from jax.experimental.pallas import tpu as pltpu

_LANES = 128
_SUBLANES = 8


def _fir_kernel(xo_ref, xt_ref, ho_ref, ht_ref, oo_ref, ot_ref,
                *, c_m1: float, c_0: float, c_p1: float, use_p1: bool,
                batch: int):
    """Fused 3-tap FIR on one flat (rows, 128) block of both tensors.

    xo_ref, xt_ref : (rows, 128) VMEM   flat signal blocks (output / target)
    ho_ref, ht_ref : (n_blocks, 2, 128) VMEM, fully resident halo table:
                       [i, 0, :batch]     = B flat samples just before block i
                                            (zeros for block 0 = left zero-pad)
                       [i, 1, 128-batch:] = B flat samples just after block i
                                            (zeros for the last block)
    oo_ref, ot_ref : (rows, 128) VMEM   filtered blocks
    """
    i = pl.program_id(0)
    rows = xo_ref.shape[0]
    B = batch
    sr = B % _LANES              # lane shift for the x[t-1] tap
    sl = (-B) % _LANES           # lane shift for the x[t+1] tap

    # Position masks built once, shared by both tensors / both taps.
    lane = jax.lax.broadcasted_iota(jnp.int32, (rows, _LANES), 1)
    row = jax.lax.broadcasted_iota(jnp.int32, (rows, _LANES), 0)
    lo_lanes = lane < B                    # shift-right-by-B wraps to prev row
    lo_edge = row == 0                     # ... and to the previous block
    if use_p1:
        hi_lanes = lane >= _LANES - B      # shift-left-by-B wraps to next row
        hi_edge = row == rows - 1          # ... and to the next block

    def lane_roll(v, s):
        return v if s == 0 else pltpu.roll(v, shift=s, axis=1)

    def row_roll(v, s):
        return v if s % rows == 0 else pltpu.roll(v, shift=s % rows, axis=0)

    def fir_one(x_ref, h_ref, o_ref):
        x = x_ref[...].astype(jnp.float32)          # (rows, 128)
        h = h_ref[i].astype(jnp.float32)            # (2, 128) halos, this block

        # x[t-1]  (flat shift right by B): lane-roll; lanes that cross a row
        # boundary take the sublane-rolled copy; the block's very first B flat
        # samples take the prev-halo row (== zero pad for block 0).
        xr = lane_roll(x, sr)
        xrs = row_roll(xr, 1)
        x_m1 = jnp.where(lo_lanes, jnp.where(lo_edge, h[0:1, :], xrs), xr)
        acc = c_m1 * x_m1 + c_0 * x

        if use_p1:
            # x[t+1]  (flat shift left by B): mirrored construction.
            xl = lane_roll(x, sl)
            xls = row_roll(xl, rows - 1)
            x_p1 = jnp.where(hi_lanes, jnp.where(hi_edge, h[1:2, :], xls), xl)
            acc = acc + c_p1 * x_p1

        o_ref[...] = acc.astype(o_ref.dtype)

    fir_one(xo_ref, ho_ref, oo_ref)
    fir_one(xt_ref, ht_ref, ot_ref)


def _pick_block_rows(n_rows: int) -> int:
    """Rows per stream block: ~2 MiB f32 blocks, >=4 blocks when possible."""
    target = 4096                                  # 4096*128*4B = 2 MiB / block
    if n_rows <= target:
        return n_rows                              # single full-extent block
    if n_rows < 4 * target:
        # Split into ~4 blocks (multiple of 8 rows) so a 2-TensorCore chip
        # (v7x) can load-balance the "parallel" grid axis.
        br = -(-n_rows // 4)
        return -(-br // _SUBLANES) * _SUBLANES
    return target


def _make_halos(x2d: jax.Array, block_rows: int, n_blocks: int,
                batch: int) -> jax.Array:
    """Tiny (n_blocks, 2, 128) halo table built from the folded signal."""
    n_rows, lanes = x2d.shape
    prev = jnp.zeros((n_blocks, lanes), x2d.dtype)
    nxt = jnp.zeros((n_blocks, lanes), x2d.dtype)
    if n_blocks > 1:
        # last B flat samples of block i-1  -> prev halo of block i (lanes [0,B))
        prev_vals = x2d[block_rows - 1::block_rows][:n_blocks - 1, lanes - batch:]
        # first B flat samples of block i+1 -> next halo of block i (lanes [128-B,128))
        nxt_vals = x2d[block_rows::block_rows][:n_blocks - 1, :batch]
        prev = prev.at[1:, :batch].set(prev_vals)
        nxt = nxt.at[:-1, lanes - batch:].set(nxt_vals)
    return jnp.stack([prev, nxt], axis=1)          # (n_blocks, 2, 128)


def wright_preemph(output: jax.Array, target: jax.Array, filter_cfs,
                   low_pass: bool = False, block_rows: int | None = None):
    """Apply the (optionally low-passed) pre-emphasis filter to both tensors."""
    T, B, C = output.shape
    assert C == 1 and target.shape == output.shape, "expected (T, B, 1) inputs"
    assert B <= _LANES, "flat-shift kernel assumes batch <= 128"
    # TODO(synk): support batch > 128 (the ±B flat shift would span >1 rows).

    w0, w1 = float(filter_cfs[0]), float(filter_cfs[1])
    if low_pass:
        c_m1, c_0, c_p1 = 0.85 * w0, 0.85 * w1 + 1.0 * w0, 1.0 * w1
        use_p1 = True
    else:
        c_m1, c_0, c_p1 = w0, w1, 0.0
        use_p1 = False

    # Zero-copy flat view of the row-major (T, B, 1) signal, tail-padded to a
    # multiple of 8*128 so it folds into a lane-dense (n_rows, 128) slab.
    n = T * B
    n_rows = -(-n // (_SUBLANES * _LANES)) * _SUBLANES
    n_pad = n_rows * _LANES

    def to_2d(x):
        flat = x.reshape(n)
        if n_pad != n:
            flat = jnp.pad(flat, (0, n_pad - n))
        return flat.reshape(n_rows, _LANES)

    xo, xt = to_2d(output), to_2d(target)

    if block_rows is None:
        block_rows = _pick_block_rows(n_rows)
    block_rows = min(block_rows, n_rows)
    n_blocks = -(-n_rows // block_rows)

    ho = _make_halos(xo, block_rows, n_blocks, B)
    ht = _make_halos(xt, block_rows, n_blocks, B)

    stream_spec = pl.BlockSpec((block_rows, _LANES), lambda i: (i, 0))
    # Constant block index -> loaded once, stays VMEM-resident across the grid.
    halo_spec = pl.BlockSpec((n_blocks, 2, _LANES), lambda i: (0, 0, 0))

    kernel = functools.partial(_fir_kernel, c_m1=c_m1, c_0=c_0, c_p1=c_p1,
                               use_p1=use_p1, batch=B)

    oo, ot = pl.pallas_call(
        kernel,
        out_shape=(jax.ShapeDtypeStruct((n_rows, _LANES), xo.dtype),
                   jax.ShapeDtypeStruct((n_rows, _LANES), xt.dtype)),
        grid=(n_blocks,),
        in_specs=[stream_spec, stream_spec, halo_spec, halo_spec],
        out_specs=(stream_spec, stream_spec),
        compiler_params=pltpu.CompilerParams(
            dimension_semantics=("parallel",),
            vmem_limit_bytes=32 * 1024 * 1024),
    )(xo, xt, ho, ht)

    t_out = T - 1 if low_pass else T
    n_out = t_out * B

    def from_2d(y):
        flat = y.reshape(n_pad)
        if n_out != n_pad:
            flat = flat[:n_out]                    # drop tail-pad outputs
        return flat.reshape(t_out, B, 1)

    return from_2d(oo), from_2d(ot)


class WrightPreEmphPallas:
    """JAX/Pallas port of WrightPreEmph (forward pass only)."""

    def __init__(self, filter_cfs, low_pass: bool = False):
        assert len(filter_cfs) == 2, "Conv1d kernel_size is 2"
        self.epsilon = 1e-05                       # unused in forward (parity)
        self.zPad = len(filter_cfs) - 1
        self.low_pass = low_pass
        self.filter_cfs = [float(c) for c in filter_cfs]

    def __call__(self, output: jax.Array, target: jax.Array,
                 block_rows: int | None = None):
        return wright_preemph(output, target, self.filter_cfs,
                              low_pass=self.low_pass, block_rows=block_rows)


def _reference(x_tb1, filter_cfs, low_pass):
    """Pure-JAX reference matching the PyTorch forward (sequential convs)."""
    x = x_tb1[:, :, 0]                             # (T, B)
    xp = jnp.concatenate([jnp.zeros((1, x.shape[1]), x.dtype), x], axis=0)
    y = filter_cfs[0] * xp[:-1] + filter_cfs[1] * xp[1:]
    if low_pass:
        y = 0.85 * y[:-1] + 1.0 * y[1:]
    return y[:, :, None]


if __name__ == "__main__":
    filter_cfs = [-0.95, 1.0]
    key = jax.random.PRNGKey(0)
    ok = True

    configs = [
        dict(T=16, B=4, block_rows=None),      # tiny: tail pad + single block
        dict(T=700, B=3, block_rows=8),        # forced multi-block + ragged last
        dict(T=2048, B=1, block_rows=8),       # batch=1, zero-copy fold, 2 blocks
        dict(T=512, B=128, block_rows=None),   # batch == lane width edge case
    ]

    for cfg in configs:
        T, B, br = cfg["T"], cfg["B"], cfg["block_rows"]
        key, k_out, k_tgt = jax.random.split(key, 3)
        output = jax.random.normal(k_out, (T, B, 1), dtype=jnp.float32)
        target = jax.random.normal(k_tgt, (T, B, 1), dtype=jnp.float32)

        for low_pass in (False, True):
            mod = WrightPreEmphPallas(filter_cfs, low_pass=low_pass)
            out_f, tgt_f = mod(output, target, block_rows=br)
            out_f = jax.block_until_ready(out_f)
            tgt_f = jax.block_until_ready(tgt_f)

            t_out = T - 1 if low_pass else T
            assert out_f.shape == (t_out, B, 1) and tgt_f.shape == (t_out, B, 1)

            ref_out = _reference(output, filter_cfs, low_pass)
            ref_tgt = _reference(target, filter_cfs, low_pass)
            ok &= bool(jnp.allclose(out_f, ref_out, atol=1e-5, rtol=1e-5))
            ok &= bool(jnp.allclose(tgt_f, ref_tgt, atol=1e-5, rtol=1e-5))

    print("KERNEL_OK" if ok else "MISMATCH")
</pallas_src>

<mosaic_0001>
module attributes {stable_mosaic.version = 11 : i64} {
  func.func @_fir_kernel(%arg0: i32, %arg1: memref<8x128xf32, #tpu.memory_space<vmem>>, %arg2: memref<8x128xf32, #tpu.memory_space<vmem>>, %arg3: memref<1x2x128xf32, #tpu.memory_space<vmem>>, %arg4: memref<1x2x128xf32, #tpu.memory_space<vmem>>, %arg5: memref<8x128xf32, #tpu.memory_space<vmem>>, %arg6: memref<8x128xf32, #tpu.memory_space<vmem>>) attributes {dimension_semantics = [#tpu.dimension_semantics<parallel>], iteration_bounds = array<i64: 1>, scalar_prefetch = 0 : i64, scratch_operands = 0 : i64, tpu.core_type = #tpu.core_type<tc>, window_params = [{transform_indices = @transform_0, window_bounds = array<i64: 8, 128>}, {transform_indices = @transform_1, window_bounds = array<i64: 8, 128>}, {pipeline_mode = #tpu.pipeline_mode<synchronous>, transform_indices = @transform_2, window_bounds = array<i64: 1, 2, 128>}, {pipeline_mode = #tpu.pipeline_mode<synchronous>, transform_indices = @transform_3, window_bounds = array<i64: 1, 2, 128>}, {transform_indices = @transform_4, window_bounds = array<i64: 8, 128>}, {transform_indices = @transform_5, window_bounds = array<i64: 8, 128>}]} {
    %0 = tpu.iota {dimensions = array<i32: 1>} : vector<8x128xi32>
    %1 = tpu.iota {dimensions = array<i32: 0>} : vector<8x128xi32>
    %c4_i32 = arith.constant 4 : i32
    %2 = vector.broadcast %c4_i32 : i32 to vector<8x128xi32>
    %3 = arith.cmpi slt, %0, %2 : vector<8x128xi32>
    %c0_i32 = arith.constant 0 : i32
    %4 = vector.broadcast %c0_i32 : i32 to vector<8x128xi32>
    %5 = arith.cmpi eq, %1, %4 : vector<8x128xi32>
    %c0 = arith.constant 0 : index
    %c0_0 = arith.constant 0 : index
    %6 = vector.load %arg1[%c0, %c0_0] : memref<8x128xf32, #tpu.memory_space<vmem>>, vector<8x128xf32>
    %7 = arith.index_cast %arg0 : i32 to index
    %c0_1 = arith.constant 0 : index
    %c0_2 = arith.constant 0 : index
    %8 = vector.load %arg3[%7, %c0_1, %c0_2] : memref<1x2x128xf32, #tpu.memory_space<vmem>>, vector<1x2x128xf32>
    %9 = vector.shape_cast %8 : vector<1x2x128xf32> to vector<2x128xf32>
    %c4_i32_3 = arith.constant 4 : i32
    %10 = tpu.dynamic_rotate %6 by %c4_i32_3 dim 1 : vector<8x128xf32>, i32 -> vector<8x128xf32>
    %c1_i32 = arith.constant 1 : i32
    %11 = tpu.dynamic_rotate %10 by %c1_i32 dim 0 : vector<8x128xf32>, i32 -> vector<8x128xf32>
    %12 = vector.extract_strided_slice %9 {offsets = [0, 0], sizes = [1, 128], strides = [1, 1]} : vector<2x128xf32> to vector<1x128xf32>
    %13 = vector.shape_cast %12 : vector<1x128xf32> to vector<1x128xf32>
    %14 = vector.broadcast %13 : vector<1x128xf32> to vector<8x128xf32>
    %15 = arith.select %5, %14, %11 : vector<8x128xi1>, vector<8x128xf32>
    %16 = arith.select %3, %15, %10 : vector<8x128xi1>, vector<8x128xf32>
    %cst = arith.constant -0.949999988 : f32
    %17 = vector.broadcast %cst : f32 to vector<8x128xf32>
    %18 = arith.mulf %17, %16 : vector<8x128xf32>
    %cst_4 = arith.constant 1.000000e+00 : f32
    %19 = vector.broadcast %cst_4 : f32 to vector<8x128xf32>
    %20 = arith.mulf %19, %6 : vector<8x128xf32>
    %21 = arith.addf %18, %20 : vector<8x128xf32>
    %c0_5 = arith.constant 0 : index
    %c0_6 = arith.constant 0 : index
    %22 = vector.load %arg5[%c0_5, %c0_6] : memref<8x128xf32, #tpu.memory_space<vmem>>, vector<8x128xf32>
    tpu.vector_store %arg5[%c0_5, %c0_6], %21 {strides = array<i32>} : memref<8x128xf32, #tpu.memory_space<vmem>>, vector<8x128xf32>,
    %c0_7 = arith.constant 0 : index
    %c0_8 = arith.constant 0 : index
    %23 = vector.load %arg2[%c0_7, %c0_8] : memref<8x128xf32, #tpu.memory_space<vmem>>, vector<8x128xf32>
    %24 = arith.index_cast %arg0 : i32 to index
    %c0_9 = arith.constant 0 : index
    %c0_10 = arith.constant 0 : index
    %25 = vector.load %arg4[%24, %c0_9, %c0_10] : memref<1x2x128xf32, #tpu.memory_space<vmem>>, vector<1x2x128xf32>
    %26 = vector.shape_cast %25 : vector<1x2x128xf32> to vector<2x128xf32>
    %c4_i32_11 = arith.constant 4 : i32
    %27 = tpu.dynamic_rotate %23 by %c4_i32_11 dim 1 : vector<8x128xf32>, i32 -> vector<8x128xf32>
    %c1_i32_12 = arith.constant 1 : i32
    %28 = tpu.dynamic_rotate %27 by %c1_i32_12 dim 0 : vector<8x128xf32>, i32 -> vector<8x128xf32>
    %29 = vector.extract_strided_slice %26 {offsets = [0, 0], sizes = [1, 128], strides = [1, 1]} : vector<2x128xf32> to vector<1x128xf32>
    %30 = vector.shape_cast %29 : vector<1x128xf32> to vector<1x128xf32>
    %31 = vector.broadcast %30 : vector<1x128xf32> to vector<8x128xf32>
    %32 = arith.select %5, %31, %28 : vector<8x128xi1>, vector<8x128xf32>
    %33 = arith.select %3, %32, %27 : vector<8x128xi1>, vector<8x128xf32>
    %cst_13 = arith.constant -0.949999988 : f32
    %34 = vector.broadcast %cst_13 : f32 to vector<8x128xf32>
    %35 = arith.mulf %34, %33 : vector<8x128xf32>
    %cst_14 = arith.constant 1.000000e+00 : f32
    %36 = vector.broadcast %cst_14 : f32 to vector<8x128xf32>
    %37 = arith.mulf %36, %23 : vector<8x128xf32>
    %38 = arith.addf %35, %37 : vector<8x128xf32>
    %c0_15 = arith.constant 0 : index
    %c0_16 = arith.constant 0 : index
    %39 = vector.load %arg6[%c0_15, %c0_16] : memref<8x128xf32, #tpu.memory_space<vmem>>, vector<8x128xf32>
    tpu.vector_store %arg6[%c0_15, %c0_16], %38 {strides = array<i32>} : memref<8x128xf32, #tpu.memory_space<vmem>>, vector<8x128xf32>,
    return
  }
  func.func @transform_0(%arg0: i32) -> (i32, i32) {
    %c0_i32 = arith.constant 0 : i32
    %c0_i32_0 = arith.constant 0 : i32
    return %arg0, %c0_i32 : i32, i32
  }
  func.func @transform_1(%arg0: i32) -> (i32, i32) {
    %c0_i32 = arith.constant 0 : i32
    %c0_i32_0 = arith.constant 0 : i32
    return %arg0, %c0_i32 : i32, i32
  }
  func.func @transform_2(%arg0: i32) -> (i32, i32, i32) {
    %c0_i32 = arith.constant 0 : i32
    %c0_i32_0 = arith.constant 0 : i32
    %c0_i32_1 = arith.constant 0 : i32
    %c0_i32_2 = arith.constant 0 : i32
    return %c0_i32, %c0_i32_0, %c0_i32_1 : i32, i32, i32
  }
  func.func @transform_3(%arg0: i32) -> (i32, i32, i32) {
    %c0_i32 = arith.constant 0 : i32
    %c0_i32_0 = arith.constant 0 : i32
    %c0_i32_1 = arith.constant 0 : i32
    %c0_i32_2 = arith.constant 0 : i32
    return %c0_i32, %c0_i32_0, %c0_i32_1 : i32, i32, i32
  }
  func.func @transform_4(%arg0: i32) -> (i32, i32) {
    %c0_i32 = arith.constant 0 : i32
    %c0_i32_0 = arith.constant 0 : i32
    return %arg0, %c0_i32 : i32, i32
  }
  func.func @transform_5(%arg0: i32) -> (i32, i32) {
    %c0_i32 = arith.constant 0 : i32
    %c0_i32_0 = arith.constant 0 : i32
    return %arg0, %c0_i32 : i32, i32
  }
}

</mosaic_0001>

<llo_original>
// kernel: tpu_custom_call.1
$region0: #{tpu_custom_call.1}
  #allocation0 [shape = 'u32[]', space=smem, size = 0x4, offset = 0x4, fixed_abs, tag = 'smem constant byte address 0x4 - core index']
  #allocation1 [shape = 'u32[144,128]{1,0:T(1,128)}', space=vmem, size = 0x12000, scoped, tag = 'internal scratch']
  %s0 = inlined_call_operand.hbm [shape: f32[8,128], index: 0, kind: input, shape index: {}]
  %s1 = inlined_call_operand.hbm [shape: f32[8,128], index: 1, kind: input, shape index: {}]
  %s2 = inlined_call_operand.vmem [shape: f32[1,2,128], index: 2, kind: input, shape index: {}]
  %s3 = inlined_call_operand.vmem [shape: f32[1,2,128], index: 3, kind: input, shape index: {}]
  %s4 = inlined_call_operand.hbm [shape: f32[8,128], index: 4, kind: output, shape index: {0}]
  %s5 = inlined_call_operand.hbm [shape: f32[8,128], index: 5, kind: output, shape index: {1}]
  %6 = xla_tuple %s4, %s5
  %s7 = sld [smem:[#allocation0]]
  $region42: #{tpu_custom_call.1} parent=0
    _
  %s9 = ssub.s32 1, %s7
  %s10 = scalar_select 0, %s9, %s7
  $region1: #{tpu_custom_call.1} parent=0
    #allocation2 [shape = 'u8[4096]{0}', space=vmem, size = 0x1000, scoped, tag = 'input window, operand 0, single buffered']
    #allocation3 [shape = 's32[1]{0}', space=sflag, size = 0x4, scoped, tag = 'scoped memory for tpu_custom_call.1']
    #allocation4 [shape = 's32[1]{0}', space=sflag, size = 0x4, scoped, tag = 'scoped memory for tpu_custom_call.1']
    #allocation5 [shape = 'u8[4096]{0}', space=vmem, size = 0x1000, scoped, tag = 'input window, operand 1, single buffered']
    #allocation6 [shape = 's32[1]{0}', space=sflag, size = 0x4, scoped, tag = 'scoped memory for tpu_custom_call.1']
    #allocation7 [shape = 'u8[4096]{0}', space=vmem, size = 0x1000, scoped, tag = 'output window, operand 0, single buffered']
    #allocation8 [shape = 'u8[4096]{0}', space=vmem, size = 0x1000, scoped, tag = 'output window, operand 1, single buffered']
    #allocation9 [shape = 's32[1]{0}', space=sflag, size = 0x4, scoped, tag = 'scoped memory for tpu_custom_call.1']
    %11 = vsyncpa [#allocation3], 0
    %12 = vsyncpa [#allocation6], 0
    %13 = vsyncpa [#allocation4], 0
    %14 = vsyncpa [#allocation9], 0
    // Predicated region
    $region2: #{tpu_custom_call.1} parent=1 // pred_check
      _
    $region3: #{tpu_custom_call.1} parent=1 // pred_check_branch
      %16 = sbr.rel (0) target = $region5
    $region4: #{tpu_custom_call.1} parent=1 // pred_region
      %s18 = ssub.s32 128, 128
      %19 = vsyncadd [#allocation3], %s18
      %s21 = sshll.u32 [#allocation2], 4
      %s22 = int_to_ptr.vmem [resolvable:$true] %s21
      %24 = dma.hbm_to_vmem [thread:$0]  %s0, 128, %s22, [#allocation3]
    $region5: #{tpu_custom_call.1} parent=1 // pred_fallthru
      _
    // Predicated region
    $region6: #{tpu_custom_call.1} parent=1 // pred_check
      _
    $region7: #{tpu_custom_call.1} parent=1 // pred_check_branch
      %26 = sbr.rel (0) target = $region9
    $region8: #{tpu_custom_call.1} parent=1 // pred_region
      %s28 = ssub.s32 128, 128
      %29 = vsyncadd [#allocation6], %s28
      %s31 = sshll.u32 [#allocation5], 4
      %s32 = int_to_ptr.vmem [resolvable:$true] %s31
      %34 = dma.hbm_to_vmem [thread:$0]  %s1, 128, %s32, [#allocation6]
    $region9: #{tpu_custom_call.1} parent=1 // pred_fallthru
      _
    // Predicated region
    $region10: #{tpu_custom_call.1} parent=1 // pred_check
      _
    $region11: #{tpu_custom_call.1} parent=1 // pred_check_branch
      %36 = sbr.rel (0) target = $region13
    $region12: #{tpu_custom_call.1} parent=1 // pred_region
      _
    $region13: #{tpu_custom_call.1} parent=1 // pred_fallthru
      _
    // Predicated region
    $region14: #{tpu_custom_call.1} parent=1 // pred_check
      _
    $region15: #{tpu_custom_call.1} parent=1 // pred_check_branch
      %38 = sbr.rel (0) target = $region17
    $region16: #{tpu_custom_call.1} parent=1 // pred_region
      _
    $region17: #{tpu_custom_call.1} parent=1 // pred_fallthru
      _
    // Predicated region
    $region18: #{tpu_custom_call.1} parent=1 // pred_check
      _
    $region19: #{tpu_custom_call.1} parent=1 // pred_check_branch
      %40 = sbr.rel (0) target = $region21
    $region20: #{tpu_custom_call.1} parent=1 // pred_region
      %41 = dma.done [#allocation3], 128
    $region21: #{tpu_custom_call.1} parent=1 // pred_fallthru
      _
    // Predicated region
    $region22: #{tpu_custom_call.1} parent=1 // pred_check
      _
    $region23: #{tpu_custom_call.1} parent=1 // pred_check_branch
      %43 = sbr.rel (0) target = $region25
    $region24: #{tpu_custom_call.1} parent=1 // pred_region
      %44 = dma.done [#allocation6], 128
    $region25: #{tpu_custom_call.1} parent=1 // pred_fallthru
      _
    %v45 = vlaneseq
    %v46 = vand.u32 %v45, 127
    %v47 = vlaneseq
    %v48 = vshrl.u32 %v47, 7
    %vm49 = vcmp.lt.s32.totalorder %v46, 4
    %vm50 = vcmp.eq.s32.totalorder %v48, 0
    %v51 = vld [vmem:[#allocation2] sm:$0xff]
    %s52 = smul.u32 0, 2
    %s53 = scalar_lea.vmem %s2, %s52
    %v54 = vld [vmem:[%s53] sm:$0x3]
    %55 = vrot.lane.b32.xlu0 %v51, 4
    %v56 = vpop.permute.xlu0 %55
    %v57 = vrot.slane %v56, 7
    %v58 = vlaneseq
    %v59 = vshrl.u32 %v58, 7
    %v60 = vsub.s32 0, %v59
    %v61 = vrot.slane %v54, %v60
    %v62 = vsel %vm50, %v61, %v57
    %v63 = vsel %vm49, %v62, %v56
    %v64 = vmul.f32 %v63, -0.95
    %v65 = vadd.f32 %v64, %v51
    %66 = vst [vmem:[#allocation7] sm:$0xff] %v65
    %v67 = vld [vmem:[#allocation5] sm:$0xff]
    %s68 = scalar_lea.vmem %s3, %s52
    %v69 = vld [vmem:[%s68] sm:$0x3]
    %70 = vrot.lane.b32.xlu0 %v67, 4
    %v71 = vpop.permute.xlu0 %70
    %v72 = vrot.slane %v71, 7
    %v73 = vlaneseq
    %v74 = vshrl.u32 %v73, 7
    %v75 = vsub.s32 0, %v74
    %v76 = vrot.slane %v69, %v75
    %v77 = vsel %vm50, %v76, %v72
    %v78 = vsel %vm49, %v77, %v71
    %v79 = vmul.f32 %v78, -0.95
    %v80 = vadd.f32 %v79, %v67
    %81 = vst [vmem:[#allocation8] sm:$0xff] %v80
    // Predicated region
    $region26: #{tpu_custom_call.1} parent=1 // pred_check
      _
    $region27: #{tpu_custom_call.1} parent=1 // pred_check_branch
      %83 = sbr.rel (0) target = $region29
    $region28: #{tpu_custom_call.1} parent=1 // pred_region
      %s85 = ssub.s32 128, 128
      %86 = vsyncadd [#allocation4], %s85
      %s88 = sshll.u32 [#allocation7], 4
      %s89 = int_to_ptr.vmem [resolvable:$true] %s88
      %91 = dma.vmem_to_hbm [thread:$0]  %s89, 128, %s4, [#allocation4]
    $region29: #{tpu_custom_call.1} parent=1 // pred_fallthru
      _
    // Predicated region
    $region30: #{tpu_custom_call.1} parent=1 // pred_check
      _
    $region31: #{tpu_custom_call.1} parent=1 // pred_check_branch
      %93 = sbr.rel (0) target = $region33
    $region32: #{tpu_custom_call.1} parent=1 // pred_region
      %s95 = ssub.s32 128, 128
      %96 = vsyncadd [#allocation9], %s95
      %s98 = sshll.u32 [#allocation8], 4
      %s99 = int_to_ptr.vmem [resolvable:$true] %s98
      %101 = dma.vmem_to_hbm [thread:$0]  %s99, 128, %s5, [#allocation9]
    $region33: #{tpu_custom_call.1} parent=1 // pred_fallthru
      _
    // Predicated region
    $region34: #{tpu_custom_call.1} parent=1 // pred_check
      _
    $region35: #{tpu_custom_call.1} parent=1 // pred_check_branch
      %103 = sbr.rel (0) target = $region37
    $region36: #{tpu_custom_call.1} parent=1 // pred_region
      %104 = dma.done [#allocation4], 128
    $region37: #{tpu_custom_call.1} parent=1 // pred_fallthru
      _
    // Predicated region
    $region38: #{tpu_custom_call.1} parent=1 // pred_check
      _
    $region39: #{tpu_custom_call.1} parent=1 // pred_check_branch
      %106 = sbr.rel (0) target = $region41
    $region40: #{tpu_custom_call.1} parent=1 // pred_region
      %107 = dma.done [#allocation9], 128
    $region41: #{tpu_custom_call.1} parent=1 // pred_fallthru
      _
    %108 = vsyncpa [#allocation3], 1
    %109 = vsyncpa [#allocation6], 1
    %110 = vsyncpa [#allocation4], 1
    %111 = vsyncpa [#allocation9], 1

</llo_original>
